<compile_context>
chip_gen: v7x
topology: tpu7x:2x2x1
jax: 0.10.0
libtpu: 0.0.40
codegen_flags: <defaults>
</compile_context>

<pallas_src>
import functools

import jax
import jax.numpy as jnp
import numpy as np
from jax import lax
from jax.experimental import pallas as pl
from jax.experimental.pallas import tpu as pltpu

LANES = 128
EPS = 1e-8

_FANOUT = 16            # candidate lambdas per search step (2 sublane vregs)
_SEARCH_STEPS = 6       # (FANOUT+1)^6 ~ 2.4e7 bracket shrink -> lam ~1e-7
_NEG_BIG = -1e30        # padded-lane pin (clip() then yields weight_min there)
_POS_BIG = 1e30
_V_GUARD = 1e20         # keeps the pin trick safe for pathological |v|

# output row layout
_ROW_W, _ROW_WL, _ROW_TOTAL = 0, 1, 2


def _dynamic_loss_weights_kernel(losses_ref, logv_ref, iw_ref, params_ref,
                                 out_ref, *, beta):
    losses = losses_ref[...]                          # (1, LANES)
    logv = logv_ref[...]
    iw = iw_ref[...]

    total_weight = params_ref[0]                      # SMEM scalars
    weight_min = params_ref[1]
    weight_max = params_ref[2]
    n_f = params_ref[3]

    # validity mask computed in-kernel (no mask row DMA'd in).
    lane = lax.broadcasted_iota(jnp.int32, (1, LANES), 1).astype(jnp.float32)
    valid = lane < n_f                                # (1, LANES) bool
    maskf = valid.astype(jnp.float32)

    # --- dynamic weight proposal --------------------------------------------
    loss_values = jnp.abs(losses) + EPS
    unc = jnp.exp(logv)                               # one EUP pass, reused
    ratio = loss_values / (iw * unc + EPS)
    adjustment = ratio if beta == 1.0 else ratio ** beta   # skip pow if beta==1
    v = iw * adjustment
    v = jnp.clip(v, -_V_GUARD, _V_GUARD)              # guard the pin trick
    # Pin padded lanes to -BIG: clip() then yields weight_min there, so the
    # mask never enters the hot loop; their constant contribution is folded
    # into `target`.
    v = jnp.where(valid, v, jnp.float32(_NEG_BIG))
    target = total_weight + (jnp.float32(LANES) - n_f) * weight_min

    # --- projection onto {sum(w) = total, min <= w <= max} -------------------
    #   w_i(lam) = clip(v_i + lam, min, max);  sum_i w_i(lam) monotone in lam.
    # 16-way bracket search: 16 candidate lambdas per step (one per sublane of
    # two vregs), one VPU add+clip + one exact XLU lane reduce, 17x shrink/step.
    vmax = jnp.max(v, axis=-1, keepdims=True)                             # (1,1)
    vmin = jnp.min(jnp.where(valid, v, jnp.float32(_POS_BIG)), axis=-1,
                   keepdims=True)                                         # (1,1)
    lo0 = weight_min - vmax          # sum(lo0) = n*min <= total  (feasible)
    hi0 = weight_max - vmin          # sum(hi0) = n*max >= total  (feasible)

    vb = jnp.broadcast_to(v, (_FANOUT, LANES))        # hoisted out of the loop
    offs = (lax.broadcasted_iota(jnp.int32, (_FANOUT, 1), 0) + 1
            ).astype(jnp.float32)                     # 1.._FANOUT per sublane
    inv_shrink = jnp.float32(1.0 / (_FANOUT + 1))

    def body(_, carry):
        lo, hi = carry                                # (1,1) each
        delta = (hi - lo) * inv_shrink
        cand = lo + offs * delta                      # (_FANOUT,1) candidates
        clipped = jnp.clip(vb + cand, weight_min, weight_max)
        s = jnp.sum(clipped, axis=-1, keepdims=True)  # exact f32 lane reduce
        below = s < target
        lo = jnp.max(jnp.where(below, cand, lo), axis=0, keepdims=True)
        hi = jnp.min(jnp.where(below, hi, cand), axis=0, keepdims=True)
        return lo, hi

    lo, hi = lax.fori_loop(0, _SEARCH_STEPS, body, (lo0, hi0), unroll=True)
    lam = 0.5 * (lo + hi)
    weights = jnp.clip(v + lam, weight_min, weight_max) * maskf

    # --- weighted losses & total ---------------------------------------------
    weighted = (weights * losses / (2.0 * unc * unc) + logv) * maskf
    total = jnp.sum(weighted, axis=-1, keepdims=True)                     # (1,1)

    out_ref[_ROW_W:_ROW_W + 1, :] = weights
    out_ref[_ROW_WL:_ROW_WL + 1, :] = weighted
    out_ref[_ROW_TOTAL:_ROW_TOTAL + 1, :] = jnp.broadcast_to(total, (1, LANES))


def dynamic_loss_weights_forward(losses, log_vars, initial_weights, *,
                                 beta=1.0, total_weight=3.0,
                                 weight_min=0.5, weight_max=1.5):
    """losses, log_vars, initial_weights: 1-D f32 arrays of length N."""
    n = int(losses.shape[0])
    assert 0 < n <= LANES
    # TODO(synk): the PyTorch module falls back to redistribute_weights() when
    # the SLSQP constraint set is infeasible; here feasibility is required.
    assert n * weight_min <= total_weight <= n * weight_max

    def pad_row(x):
        x = jnp.asarray(x, jnp.float32).reshape(-1)
        return jnp.pad(x, (0, LANES - n)).reshape(1, LANES)

    losses_row = pad_row(losses)
    logv_row = pad_row(log_vars)
    iw_row = pad_row(initial_weights)
    # Hyperparameters + n live in SMEM -> no Mosaic recompile when they change.
    params = jnp.array([total_weight, weight_min, weight_max, float(n)],
                       dtype=jnp.float32)

    kernel = functools.partial(_dynamic_loss_weights_kernel, beta=float(beta))

    row_spec = pl.BlockSpec((1, LANES), lambda: (0, 0), memory_space=pltpu.VMEM)
    smem_spec = pl.BlockSpec(memory_space=pltpu.SMEM)
    out_spec = pl.BlockSpec((3, LANES), lambda: (0, 0), memory_space=pltpu.VMEM)

    # Gridless single-tile kernel: a few tiny input DMAs, one (3,128) output.
    # (If many independent loss groups were evaluated per step, batch them
    #  behind a leading "parallel" grid axis so both v7x TensorCores get work
    #  and the per-call launch overhead is amortized on v5e/v6e.)
    out = pl.pallas_call(
        kernel,
        out_shape=jax.ShapeDtypeStruct((3, LANES), jnp.float32),
        in_specs=[row_spec, row_spec, row_spec, smem_spec],
        out_specs=out_spec,
    )(losses_row, logv_row, iw_row, params)

    total = out[_ROW_TOTAL, 0]
    weighted = out[_ROW_WL, :n]
    weights = out[_ROW_W, :n]
    return total, weighted, weights


if __name__ == "__main__":
    # Deterministic setup consistent with the module's __init__:
    loss_names = ["recon", "kl", "perceptual", "adv"]
    initial_weights = jnp.array([1.0, 0.8, 1.2, 1.0], dtype=jnp.float32)
    # nn.Parameter(torch.tensor([0.0])) for every loss name:
    log_vars = jnp.zeros((len(loss_names),), dtype=jnp.float32)

    key = jax.random.PRNGKey(0)
    losses = jax.random.normal(key, (len(loss_names),), dtype=jnp.float32) * 2.0

    total_loss, weighted_losses, weights = dynamic_loss_weights_forward(
        losses, log_vars, initial_weights,
        beta=1.0, total_weight=3.0, weight_min=0.5, weight_max=1.5)

    jax.block_until_ready((total_loss, weighted_losses, weights))

    # float64 numpy reference of the same math; exact projection by bisection.
    l_np = np.asarray(losses, dtype=np.float64)
    lv_np = np.asarray(log_vars, dtype=np.float64)
    iw_np = np.asarray(initial_weights, dtype=np.float64)
    wmin, wmax, tot = 0.5, 1.5, 3.0
    loss_vals = np.abs(l_np) + EPS
    unc_np = np.exp(lv_np)
    v_np = iw_np * (loss_vals / (iw_np * unc_np + EPS)) ** 1.0
    lo_r, hi_r = wmin - v_np.max(), wmax - v_np.min()
    for _ in range(200):
        mid = 0.5 * (lo_r + hi_r)
        if np.clip(v_np + mid, wmin, wmax).sum() < tot:
            lo_r = mid
        else:
            hi_r = mid
    lam_ref = 0.5 * (lo_r + hi_r)
    w_ref = np.clip(v_np + lam_ref, wmin, wmax)
    wl_ref = w_ref * l_np / (2.0 * np.exp(lv_np) ** 2) + lv_np

    assert np.allclose(np.asarray(weights), w_ref, atol=1e-4)
    assert np.allclose(np.asarray(weighted_losses), wl_ref, atol=1e-4)
    assert np.allclose(float(total_loss), wl_ref.sum(), atol=1e-4)

    print("KERNEL_OK")
</pallas_src>

<mosaic_0001>
module attributes {stable_mosaic.version = 11 : i64} {
  func.func @_dynamic_loss_weights_kernel(%arg0: memref<1x128xf32, #tpu.memory_space<vmem>>, %arg1: memref<1x128xf32, #tpu.memory_space<vmem>>, %arg2: memref<1x128xf32, #tpu.memory_space<vmem>>, %arg3: memref<4xf32, #tpu.memory_space<smem>>, %arg4: memref<3x128xf32, #tpu.memory_space<vmem>>) attributes {dimension_semantics = [], scalar_prefetch = 0 : i64, scratch_operands = 0 : i64, tpu.core_type = #tpu.core_type<tc>} {
    %c0 = arith.constant 0 : index
    %c0_0 = arith.constant 0 : index
    %0 = vector.load %arg0[%c0, %c0_0] : memref<1x128xf32, #tpu.memory_space<vmem>>, vector<1x128xf32>
    %c0_1 = arith.constant 0 : index
    %c0_2 = arith.constant 0 : index
    %1 = vector.load %arg1[%c0_1, %c0_2] : memref<1x128xf32, #tpu.memory_space<vmem>>, vector<1x128xf32>
    %c0_3 = arith.constant 0 : index
    %c0_4 = arith.constant 0 : index
    %2 = vector.load %arg2[%c0_3, %c0_4] : memref<1x128xf32, #tpu.memory_space<vmem>>, vector<1x128xf32>
    %c0_5 = arith.constant 0 : index
    %3 = memref.load %arg3[%c0_5] : memref<4xf32, #tpu.memory_space<smem>>
    %c1 = arith.constant 1 : index
    %4 = memref.load %arg3[%c1] : memref<4xf32, #tpu.memory_space<smem>>
    %c2 = arith.constant 2 : index
    %5 = memref.load %arg3[%c2] : memref<4xf32, #tpu.memory_space<smem>>
    %c3 = arith.constant 3 : index
    %6 = memref.load %arg3[%c3] : memref<4xf32, #tpu.memory_space<smem>>
    %7 = tpu.iota {dimensions = array<i32: 1>} : vector<1x128xi32>
    %8 = arith.sitofp %7 : vector<1x128xi32> to vector<1x128xf32>
    %9 = vector.broadcast %6 : f32 to vector<1x128xf32>
    %10 = arith.cmpf olt, %8, %9 : vector<1x128xf32>
    %11 = arith.extui %10 : vector<1x128xi1> to vector<1x128xi32>
    %12 = arith.sitofp %11 : vector<1x128xi32> to vector<1x128xf32>
    %13 = math.absf %0 : vector<1x128xf32>
    %cst = arith.constant 9.99999993E-9 : f32
    %14 = vector.broadcast %cst : f32 to vector<1x128xf32>
    %15 = arith.addf %13, %14 : vector<1x128xf32>
    %16 = math.exp %1 : vector<1x128xf32>
    %17 = arith.mulf %2, %16 : vector<1x128xf32>
    %cst_6 = arith.constant 9.99999993E-9 : f32
    %18 = vector.broadcast %cst_6 : f32 to vector<1x128xf32>
    %19 = arith.addf %17, %18 : vector<1x128xf32>
    %20 = arith.divf %15, %19 : vector<1x128xf32>
    %21 = arith.mulf %2, %20 : vector<1x128xf32>
    %cst_7 = arith.constant -1.000000e+20 : f32
    %cst_8 = arith.constant 1.000000e+20 : f32
    %22 = vector.broadcast %cst_7 : f32 to vector<1x128xf32>
    %23 = arith.maximumf %22, %21 : vector<1x128xf32>
    %24 = vector.broadcast %cst_8 : f32 to vector<1x128xf32>
    %25 = arith.minimumf %24, %23 : vector<1x128xf32>
    %cst_9 = arith.constant -1.000000e+30 : f32
    %26 = vector.broadcast %cst_9 : f32 to vector<1x128xf32>
    %27 = arith.select %10, %25, %26 : vector<1x128xi1>, vector<1x128xf32>
    %cst_10 = arith.constant 1.280000e+02 : f32
    %28 = arith.subf %cst_10, %6 : f32
    %29 = arith.mulf %28, %4 : f32
    %30 = arith.addf %3, %29 : f32
    %cst_11 = arith.constant dense<0xFF800000> : vector<1xf32>
    %31 = vector.multi_reduction <maximumf>, %27, %cst_11 [1] : vector<1x128xf32> to vector<1xf32>
    %32 = vector.shape_cast %31 : vector<1xf32> to vector<1x1xf32>
    %cst_12 = arith.constant 1.000000e+30 : f32
    %33 = vector.broadcast %cst_12 : f32 to vector<1x128xf32>
    %34 = arith.select %10, %27, %33 : vector<1x128xi1>, vector<1x128xf32>
    %cst_13 = arith.constant dense<0x7F800000> : vector<1xf32>
    %35 = vector.multi_reduction <minimumf>, %34, %cst_13 [1] : vector<1x128xf32> to vector<1xf32>
    %36 = vector.shape_cast %35 : vector<1xf32> to vector<1x1xf32>
    %37 = vector.broadcast %4 : f32 to vector<1x1xf32>
    %38 = arith.subf %37, %32 : vector<1x1xf32>
    %39 = vector.broadcast %5 : f32 to vector<1x1xf32>
    %40 = arith.subf %39, %36 : vector<1x1xf32>
    %41 = vector.shape_cast %27 : vector<1x128xf32> to vector<1x128xf32>
    %42 = vector.broadcast %41 : vector<1x128xf32> to vector<16x128xf32>
    %43 = tpu.iota {dimensions = array<i32: 0>} : vector<16x1xi32>
    %c1_i32 = arith.constant 1 : i32
    %44 = vector.broadcast %c1_i32 : i32 to vector<16x1xi32>
    %45 = arith.addi %43, %44 : vector<16x1xi32>
    %46 = arith.sitofp %45 : vector<16x1xi32> to vector<16x1xf32>
    %cst_14 = arith.constant 0.0588235296 : f32
    %c0_i32 = arith.constant 0 : i32
    %47 = arith.subf %40, %38 : vector<1x1xf32>
    %48 = vector.broadcast %cst_14 : f32 to vector<1x1xf32>
    %49 = arith.mulf %47, %48 : vector<1x1xf32>
    %50 = vector.broadcast %49 : vector<1x1xf32> to vector<16x1xf32>
    %51 = arith.mulf %46, %50 : vector<16x1xf32>
    %52 = vector.broadcast %38 : vector<1x1xf32> to vector<16x1xf32>
    %53 = arith.addf %52, %51 : vector<16x1xf32>
    %54 = vector.broadcast %53 : vector<16x1xf32> to vector<16x128xf32>
    %55 = arith.addf %42, %54 : vector<16x128xf32>
    %56 = vector.broadcast %4 : f32 to vector<16x128xf32>
    %57 = arith.maximumf %56, %55 : vector<16x128xf32>
    %58 = vector.broadcast %5 : f32 to vector<16x128xf32>
    %59 = arith.minimumf %58, %57 : vector<16x128xf32>
    %cst_15 = arith.constant dense<0.000000e+00> : vector<16xf32>
    %60 = vector.multi_reduction <add>, %59, %cst_15 [1] : vector<16x128xf32> to vector<16xf32>
    %61 = vector.shape_cast %60 : vector<16xf32> to vector<16x1xf32>
    %62 = vector.broadcast %30 : f32 to vector<16x1xf32>
    %63 = arith.cmpf olt, %61, %62 : vector<16x1xf32>
    %64 = vector.shape_cast %38 : vector<1x1xf32> to vector<1x1xf32>
    %65 = vector.broadcast %64 : vector<1x1xf32> to vector<16x1xf32>
    %66 = arith.select %63, %53, %65 : vector<16x1xi1>, vector<16x1xf32>
    %cst_16 = arith.constant dense<0xFF800000> : vector<1xf32>
    %67 = vector.multi_reduction <maximumf>, %66, %cst_16 [0] : vector<16x1xf32> to vector<1xf32>
    %68 = vector.shape_cast %67 : vector<1xf32> to vector<1x1xf32>
    %69 = vector.shape_cast %40 : vector<1x1xf32> to vector<1x1xf32>
    %70 = vector.broadcast %69 : vector<1x1xf32> to vector<16x1xf32>
    %71 = arith.select %63, %70, %53 : vector<16x1xi1>, vector<16x1xf32>
    %cst_17 = arith.constant dense<0x7F800000> : vector<1xf32>
    %72 = vector.multi_reduction <minimumf>, %71, %cst_17 [0] : vector<16x1xf32> to vector<1xf32>
    %73 = vector.shape_cast %72 : vector<1xf32> to vector<1x1xf32>
    %c1_i32_18 = arith.constant 1 : i32
    %74 = arith.subf %73, %68 : vector<1x1xf32>
    %75 = vector.broadcast %cst_14 : f32 to vector<1x1xf32>
    %76 = arith.mulf %74, %75 : vector<1x1xf32>
    %77 = vector.broadcast %76 : vector<1x1xf32> to vector<16x1xf32>
    %78 = arith.mulf %46, %77 : vector<16x1xf32>
    %79 = vector.broadcast %68 : vector<1x1xf32> to vector<16x1xf32>
    %80 = arith.addf %79, %78 : vector<16x1xf32>
    %81 = vector.broadcast %80 : vector<16x1xf32> to vector<16x128xf32>
    %82 = arith.addf %42, %81 : vector<16x128xf32>
    %83 = vector.broadcast %4 : f32 to vector<16x128xf32>
    %84 = arith.maximumf %83, %82 : vector<16x128xf32>
    %85 = vector.broadcast %5 : f32 to vector<16x128xf32>
    %86 = arith.minimumf %85, %84 : vector<16x128xf32>
    %cst_19 = arith.constant dense<0.000000e+00> : vector<16xf32>
    %87 = vector.multi_reduction <add>, %86, %cst_19 [1] : vector<16x128xf32> to vector<16xf32>
    %88 = vector.shape_cast %87 : vector<16xf32> to vector<16x1xf32>
    %89 = vector.broadcast %30 : f32 to vector<16x1xf32>
    %90 = arith.cmpf olt, %88, %89 : vector<16x1xf32>
    %91 = vector.shape_cast %68 : vector<1x1xf32> to vector<1x1xf32>
    %92 = vector.broadcast %91 : vector<1x1xf32> to vector<16x1xf32>
    %93 = arith.select %90, %80, %92 : vector<16x1xi1>, vector<16x1xf32>
    %cst_20 = arith.constant dense<0xFF800000> : vector<1xf32>
    %94 = vector.multi_reduction <maximumf>, %93, %cst_20 [0] : vector<16x1xf32> to vector<1xf32>
    %95 = vector.shape_cast %94 : vector<1xf32> to vector<1x1xf32>
    %96 = vector.shape_cast %73 : vector<1x1xf32> to vector<1x1xf32>
    %97 = vector.broadcast %96 : vector<1x1xf32> to vector<16x1xf32>
    %98 = arith.select %90, %97, %80 : vector<16x1xi1>, vector<16x1xf32>
    %cst_21 = arith.constant dense<0x7F800000> : vector<1xf32>
    %99 = vector.multi_reduction <minimumf>, %98, %cst_21 [0] : vector<16x1xf32> to vector<1xf32>
    %100 = vector.shape_cast %99 : vector<1xf32> to vector<1x1xf32>
    %c2_i32 = arith.constant 2 : i32
    %101 = arith.subf %100, %95 : vector<1x1xf32>
    %102 = vector.broadcast %cst_14 : f32 to vector<1x1xf32>
    %103 = arith.mulf %101, %102 : vector<1x1xf32>
    %104 = vector.broadcast %103 : vector<1x1xf32> to vector<16x1xf32>
    %105 = arith.mulf %46, %104 : vector<16x1xf32>
    %106 = vector.broadcast %95 : vector<1x1xf32> to vector<16x1xf32>
    %107 = arith.addf %106, %105 : vector<16x1xf32>
    %108 = vector.broadcast %107 : vector<16x1xf32> to vector<16x128xf32>
    %109 = arith.addf %42, %108 : vector<16x128xf32>
    %110 = vector.broadcast %4 : f32 to vector<16x128xf32>
    %111 = arith.maximumf %110, %109 : vector<16x128xf32>
    %112 = vector.broadcast %5 : f32 to vector<16x128xf32>
    %113 = arith.minimumf %112, %111 : vector<16x128xf32>
    %cst_22 = arith.constant dense<0.000000e+00> : vector<16xf32>
    %114 = vector.multi_reduction <add>, %113, %cst_22 [1] : vector<16x128xf32> to vector<16xf32>
    %115 = vector.shape_cast %114 : vector<16xf32> to vector<16x1xf32>
    %116 = vector.broadcast %30 : f32 to vector<16x1xf32>
    %117 = arith.cmpf olt, %115, %116 : vector<16x1xf32>
    %118 = vector.shape_cast %95 : vector<1x1xf32> to vector<1x1xf32>
    %119 = vector.broadcast %118 : vector<1x1xf32> to vector<16x1xf32>
    %120 = arith.select %117, %107, %119 : vector<16x1xi1>, vector<16x1xf32>
    %cst_23 = arith.constant dense<0xFF800000> : vector<1xf32>
    %121 = vector.multi_reduction <maximumf>, %120, %cst_23 [0] : vector<16x1xf32> to vector<1xf32>
    %122 = vector.shape_cast %121 : vector<1xf32> to vector<1x1xf32>
    %123 = vector.shape_cast %100 : vector<1x1xf32> to vector<1x1xf32>
    %124 = vector.broadcast %123 : vector<1x1xf32> to vector<16x1xf32>
    %125 = arith.select %117, %124, %107 : vector<16x1xi1>, vector<16x1xf32>
    %cst_24 = arith.constant dense<0x7F800000> : vector<1xf32>
    %126 = vector.multi_reduction <minimumf>, %125, %cst_24 [0] : vector<16x1xf32> to vector<1xf32>
    %127 = vector.shape_cast %126 : vector<1xf32> to vector<1x1xf32>
    %c3_i32 = arith.constant 3 : i32
    %128 = arith.subf %127, %122 : vector<1x1xf32>
    %129 = vector.broadcast %cst_14 : f32 to vector<1x1xf32>
    %130 = arith.mulf %128, %129 : vector<1x1xf32>
    %131 = vector.broadcast %130 : vector<1x1xf32> to vector<16x1xf32>
    %132 = arith.mulf %46, %131 : vector<16x1xf32>
    %133 = vector.broadcast %122 : vector<1x1xf32> to vector<16x1xf32>
    %134 = arith.addf %133, %132 : vector<16x1xf32>
    %135 = vector.broadcast %134 : vector<16x1xf32> to vector<16x128xf32>
    %136 = arith.addf %42, %135 : vector<16x128xf32>
    %137 = vector.broadcast %4 : f32 to vector<16x128xf32>
    %138 = arith.maximumf %137, %136 : vector<16x128xf32>
    %139 = vector.broadcast %5 : f32 to vector<16x128xf32>
    %140 = arith.minimumf %139, %138 : vector<16x128xf32>
    %cst_25 = arith.constant dense<0.000000e+00> : vector<16xf32>
    %141 = vector.multi_reduction <add>, %140, %cst_25 [1] : vector<16x128xf32> to vector<16xf32>
    %142 = vector.shape_cast %141 : vector<16xf32> to vector<16x1xf32>
    %143 = vector.broadcast %30 : f32 to vector<16x1xf32>
    %144 = arith.cmpf olt, %142, %143 : vector<16x1xf32>
    %145 = vector.shape_cast %122 : vector<1x1xf32> to vector<1x1xf32>
    %146 = vector.broadcast %145 : vector<1x1xf32> to vector<16x1xf32>
    %147 = arith.select %144, %134, %146 : vector<16x1xi1>, vector<16x1xf32>
    %cst_26 = arith.constant dense<0xFF800000> : vector<1xf32>
    %148 = vector.multi_reduction <maximumf>, %147, %cst_26 [0] : vector<16x1xf32> to vector<1xf32>
    %149 = vector.shape_cast %148 : vector<1xf32> to vector<1x1xf32>
    %150 = vector.shape_cast %127 : vector<1x1xf32> to vector<1x1xf32>
    %151 = vector.broadcast %150 : vector<1x1xf32> to vector<16x1xf32>
    %152 = arith.select %144, %151, %134 : vector<16x1xi1>, vector<16x1xf32>
    %cst_27 = arith.constant dense<0x7F800000> : vector<1xf32>
    %153 = vector.multi_reduction <minimumf>, %152, %cst_27 [0] : vector<16x1xf32> to vector<1xf32>
    %154 = vector.shape_cast %153 : vector<1xf32> to vector<1x1xf32>
    %c4_i32 = arith.constant 4 : i32
    %155 = arith.subf %154, %149 : vector<1x1xf32>
    %156 = vector.broadcast %cst_14 : f32 to vector<1x1xf32>
    %157 = arith.mulf %155, %156 : vector<1x1xf32>
    %158 = vector.broadcast %157 : vector<1x1xf32> to vector<16x1xf32>
    %159 = arith.mulf %46, %158 : vector<16x1xf32>
    %160 = vector.broadcast %149 : vector<1x1xf32> to vector<16x1xf32>
    %161 = arith.addf %160, %159 : vector<16x1xf32>
    %162 = vector.broadcast %161 : vector<16x1xf32> to vector<16x128xf32>
    %163 = arith.addf %42, %162 : vector<16x128xf32>
    %164 = vector.broadcast %4 : f32 to vector<16x128xf32>
    %165 = arith.maximumf %164, %163 : vector<16x128xf32>
    %166 = vector.broadcast %5 : f32 to vector<16x128xf32>
    %167 = arith.minimumf %166, %165 : vector<16x128xf32>
    %cst_28 = arith.constant dense<0.000000e+00> : vector<16xf32>
    %168 = vector.multi_reduction <add>, %167, %cst_28 [1] : vector<16x128xf32> to vector<16xf32>
    %169 = vector.shape_cast %168 : vector<16xf32> to vector<16x1xf32>
    %170 = vector.broadcast %30 : f32 to vector<16x1xf32>
    %171 = arith.cmpf olt, %169, %170 : vector<16x1xf32>
    %172 = vector.shape_cast %149 : vector<1x1xf32> to vector<1x1xf32>
    %173 = vector.broadcast %172 : vector<1x1xf32> to vector<16x1xf32>
    %174 = arith.select %171, %161, %173 : vector<16x1xi1>, vector<16x1xf32>
    %cst_29 = arith.constant dense<0xFF800000> : vector<1xf32>
    %175 = vector.multi_reduction <maximumf>, %174, %cst_29 [0] : vector<16x1xf32> to vector<1xf32>
    %176 = vector.shape_cast %175 : vector<1xf32> to vector<1x1xf32>
    %177 = vector.shape_cast %154 : vector<1x1xf32> to vector<1x1xf32>
    %178 = vector.broadcast %177 : vector<1x1xf32> to vector<16x1xf32>
    %179 = arith.select %171, %178, %161 : vector<16x1xi1>, vector<16x1xf32>
    %cst_30 = arith.constant dense<0x7F800000> : vector<1xf32>
    %180 = vector.multi_reduction <minimumf>, %179, %cst_30 [0] : vector<16x1xf32> to vector<1xf32>
    %181 = vector.shape_cast %180 : vector<1xf32> to vector<1x1xf32>
    %c5_i32 = arith.constant 5 : i32
    %182 = arith.subf %181, %176 : vector<1x1xf32>
    %183 = vector.broadcast %cst_14 : f32 to vector<1x1xf32>
    %184 = arith.mulf %182, %183 : vector<1x1xf32>
    %185 = vector.broadcast %184 : vector<1x1xf32> to vector<16x1xf32>
    %186 = arith.mulf %46, %185 : vector<16x1xf32>
    %187 = vector.broadcast %176 : vector<1x1xf32> to vector<16x1xf32>
    %188 = arith.addf %187, %186 : vector<16x1xf32>
    %189 = vector.broadcast %188 : vector<16x1xf32> to vector<16x128xf32>
    %190 = arith.addf %42, %189 : vector<16x128xf32>
    %191 = vector.broadcast %4 : f32 to vector<16x128xf32>
    %192 = arith.maximumf %191, %190 : vector<16x128xf32>
    %193 = vector.broadcast %5 : f32 to vector<16x128xf32>
    %194 = arith.minimumf %193, %192 : vector<16x128xf32>
    %cst_31 = arith.constant dense<0.000000e+00> : vector<16xf32>
    %195 = vector.multi_reduction <add>, %194, %cst_31 [1] : vector<16x128xf32> to vector<16xf32>
    %196 = vector.shape_cast %195 : vector<16xf32> to vector<16x1xf32>
    %197 = vector.broadcast %30 : f32 to vector<16x1xf32>
    %198 = arith.cmpf olt, %196, %197 : vector<16x1xf32>
    %199 = vector.shape_cast %176 : vector<1x1xf32> to vector<1x1xf32>
    %200 = vector.broadcast %199 : vector<1x1xf32> to vector<16x1xf32>
    %201 = arith.select %198, %188, %200 : vector<16x1xi1>, vector<16x1xf32>
    %cst_32 = arith.constant dense<0xFF800000> : vector<1xf32>
    %202 = vector.multi_reduction <maximumf>, %201, %cst_32 [0] : vector<16x1xf32> to vector<1xf32>
    %203 = vector.shape_cast %202 : vector<1xf32> to vector<1x1xf32>
    %204 = vector.shape_cast %181 : vector<1x1xf32> to vector<1x1xf32>
    %205 = vector.broadcast %204 : vector<1x1xf32> to vector<16x1xf32>
    %206 = arith.select %198, %205, %188 : vector<16x1xi1>, vector<16x1xf32>
    %cst_33 = arith.constant dense<0x7F800000> : vector<1xf32>
    %207 = vector.multi_reduction <minimumf>, %206, %cst_33 [0] : vector<16x1xf32> to vector<1xf32>
    %208 = vector.shape_cast %207 : vector<1xf32> to vector<1x1xf32>
    %209 = arith.addf %203, %208 : vector<1x1xf32>
    %cst_34 = arith.constant 5.000000e-01 : f32
    %210 = vector.broadcast %cst_34 : f32 to vector<1x1xf32>
    %211 = arith.mulf %210, %209 : vector<1x1xf32>
    %212 = vector.broadcast %211 : vector<1x1xf32> to vector<1x128xf32>
    %213 = arith.addf %27, %212 : vector<1x128xf32>
    %214 = vector.broadcast %4 : f32 to vector<1x128xf32>
    %215 = arith.maximumf %214, %213 : vector<1x128xf32>
    %216 = vector.broadcast %5 : f32 to vector<1x128xf32>
    %217 = arith.minimumf %216, %215 : vector<1x128xf32>
    %218 = arith.mulf %217, %12 : vector<1x128xf32>
    %219 = arith.mulf %218, %0 : vector<1x128xf32>
    %cst_35 = arith.constant 2.000000e+00 : f32
    %220 = vector.broadcast %cst_35 : f32 to vector<1x128xf32>
    %221 = arith.mulf %220, %16 : vector<1x128xf32>
    %222 = arith.mulf %221, %16 : vector<1x128xf32>
    %223 = arith.divf %219, %222 : vector<1x128xf32>
    %224 = arith.addf %223, %1 : vector<1x128xf32>
    %225 = arith.mulf %224, %12 : vector<1x128xf32>
    %cst_36 = arith.constant dense<0.000000e+00> : vector<1xf32>
    %226 = vector.multi_reduction <add>, %225, %cst_36 [1] : vector<1x128xf32> to vector<1xf32>
    %227 = vector.shape_cast %226 : vector<1xf32> to vector<1x1xf32>
    %c0_37 = arith.constant 0 : index
    %c0_38 = arith.constant 0 : index
    %228 = vector.load %arg4[%c0_37, %c0_38] : memref<3x128xf32, #tpu.memory_space<vmem>>, vector<1x128xf32>
    tpu.vector_store %arg4[%c0_37, %c0_38], %218 {strides = array<i32>} : memref<3x128xf32, #tpu.memory_space<vmem>>, vector<1x128xf32>,
    %c1_39 = arith.constant 1 : index
    %c0_40 = arith.constant 0 : index
    %229 = vector.load %arg4[%c1_39, %c0_40] : memref<3x128xf32, #tpu.memory_space<vmem>>, vector<1x128xf32>
    tpu.vector_store %arg4[%c1_39, %c0_40], %225 {strides = array<i32>} : memref<3x128xf32, #tpu.memory_space<vmem>>, vector<1x128xf32>,
    %230 = vector.shape_cast %227 : vector<1x1xf32> to vector<1x1xf32>
    %231 = vector.broadcast %230 : vector<1x1xf32> to vector<1x128xf32>
    %c2_41 = arith.constant 2 : index
    %c0_42 = arith.constant 0 : index
    %232 = vector.load %arg4[%c2_41, %c0_42] : memref<3x128xf32, #tpu.memory_space<vmem>>, vector<1x128xf32>
    tpu.vector_store %arg4[%c2_41, %c0_42], %231 {strides = array<i32>} : memref<3x128xf32, #tpu.memory_space<vmem>>, vector<1x128xf32>,
    return
  }
}

</mosaic_0001>

<llo_original>
// kernel: tpu_custom_call.1
$region0: #{tpu_custom_call.1}
  #allocation0 [shape = 'u32[]', space=smem, size = 0x4, offset = 0x4, fixed_abs, tag = 'smem constant byte address 0x4 - core index']
  #allocation1 [shape = 'u32[144,128]{1,0:T(1,128)}', space=vmem, size = 0x12000, scoped, tag = 'internal scratch']
  %s0 = inlined_call_operand.hbm [shape: f32[1,128], index: 0, kind: input, shape index: {}]
  %s1 = inlined_call_operand.vmem [shape: f32[1,128], index: 1, kind: input, shape index: {}]
  %s2 = inlined_call_operand.vmem [shape: f32[1,128], index: 2, kind: input, shape index: {}]
  %s3 = inlined_call_operand.vmem [shape: f32[4], index: 3, kind: input, shape index: {}]
  %s4 = inlined_call_operand.hbm [shape: f32[3,128], index: 4, kind: output, shape index: {}]
  %s5 = sld [smem:[#allocation0]]
  $region34: #{tpu_custom_call.1} parent=0
    _
  %s7 = ssub.s32 1, %s5
  %s8 = scalar_select 0, %s7, %s5
  $region1: #{tpu_custom_call.1} parent=0
    #allocation2 [shape = 'u8[512]{0}', space=vmem, size = 0x400, scoped, tag = 'input window, operand 0, single buffered']
    #allocation3 [shape = 's32[1]{0}', space=sflag, size = 0x4, scoped, tag = 'scoped memory for tpu_custom_call.1']
    #allocation4 [shape = 's32[1]{0}', space=sflag, size = 0x4, scoped, tag = 'scoped memory for tpu_custom_call.1']
    #allocation5 [shape = 's32[1]{0}', space=sflag, size = 0x4, scoped, tag = 'scoped memory for tpu_custom_call.1']
    #allocation6 [shape = 'u8[512]{0}', space=smem, size = 0x200, scoped, tag = 'input window, operand 3, single buffered']
    #allocation7 [shape = 'u8[2048]{0}', space=vmem, size = 0x800, scoped, tag = 'output window, operand 0, single buffered']
    %9 = vsyncpa [#allocation3], 0
    %10 = vsyncpa [#allocation5], 0
    %11 = vsyncpa [#allocation4], 0
    // Predicated region
    $region2: #{tpu_custom_call.1} parent=1 // pred_check
      _
    $region3: #{tpu_custom_call.1} parent=1 // pred_check_branch
      %13 = sbr.rel (0) target = $region5
    $region4: #{tpu_custom_call.1} parent=1 // pred_region
      %s15 = ssub.s32 16, 16
      %16 = vsyncadd [#allocation3], %s15
      %s18 = sshll.u32 [#allocation2], 4
      %s19 = int_to_ptr.vmem [resolvable:$true] %s18
      %21 = dma.hbm_to_vmem [thread:$0]  %s0, 16, %s19, [#allocation3]
    $region5: #{tpu_custom_call.1} parent=1 // pred_fallthru
      _
    // Predicated region
    $region6: #{tpu_custom_call.1} parent=1 // pred_check
      _
    $region7: #{tpu_custom_call.1} parent=1 // pred_check_branch
      %23 = sbr.rel (0) target = $region9
    $region8: #{tpu_custom_call.1} parent=1 // pred_region
      _
    $region9: #{tpu_custom_call.1} parent=1 // pred_fallthru
      _
    // Predicated region
    $region10: #{tpu_custom_call.1} parent=1 // pred_check
      _
    $region11: #{tpu_custom_call.1} parent=1 // pred_check_branch
      %25 = sbr.rel (0) target = $region13
    $region12: #{tpu_custom_call.1} parent=1 // pred_region
      _
    $region13: #{tpu_custom_call.1} parent=1 // pred_fallthru
      _
    // Predicated region
    $region14: #{tpu_custom_call.1} parent=1 // pred_check
      _
    $region15: #{tpu_custom_call.1} parent=1 // pred_check_branch
      %27 = sbr.rel (0) target = $region17
    $region16: #{tpu_custom_call.1} parent=1 // pred_region
      %s29 = ssub.s32 16, 16
      %30 = vsyncadd [#allocation5], %s29
      %s32 = sshll.u32 %s3, 4
      %s33 = int_to_ptr.vmem [resolvable:$true] %s32
      %35 = dma.vmem_to_smem %s33, 16, [#allocation6], [#allocation5]
    $region17: #{tpu_custom_call.1} parent=1 // pred_fallthru
      _
    // Predicated region
    $region18: #{tpu_custom_call.1} parent=1 // pred_check
      _
    $region19: #{tpu_custom_call.1} parent=1 // pred_check_branch
      %37 = sbr.rel (0) target = $region21
    $region20: #{tpu_custom_call.1} parent=1 // pred_region
      %38 = dma.done [#allocation3], 16
    $region21: #{tpu_custom_call.1} parent=1 // pred_fallthru
      _
    // Predicated region
    $region22: #{tpu_custom_call.1} parent=1 // pred_check
      _
    $region23: #{tpu_custom_call.1} parent=1 // pred_check_branch
      %40 = sbr.rel (0) target = $region25
    $region24: #{tpu_custom_call.1} parent=1 // pred_region
      %41 = dma.done [#allocation5], 16
    $region25: #{tpu_custom_call.1} parent=1 // pred_fallthru
      _
    %42 = sfence
    %v43 = vld [vmem:[#allocation2] sm:$0x1]
    %v44 = vld [vmem:[%s1] sm:$0x1]
    %v45 = vld [vmem:[%s2] sm:$0x1]
    %s46 = sld [smem:[#allocation6]]
    %s47 = sld [smem:[#allocation6 + $0x1]]
    %s48 = sld [smem:[#allocation6 + $0x2]]
    %s49 = sld [smem:[#allocation6 + $0x3]]
    %v50 = vlaneseq
    %v51 = vand.u32 %v50, 127
    %v52 = vcvt.s32.f32 %v51
    %v53 = vstv %s49
    %vm54 = vcmp.lt.f32.partialorder %v52, %v53
    %v55 = vsel %vm54, 1, 0
    %v56 = vcvt.s32.f32 %v55
    %v57 = vand.u32 2147483647, %v43
    %v58 = vadd.f32 %v57, 1e-08
    %v59 = vmul.f32 %v44, 1.442695
    %v60 = vpow.pop %v59
    %v61 = vmul.f32 %v45, %v60
    %v62 = vadd.f32 %v61, 1e-08
    %v63 = vrcp.pop %v62
    %v64 = vmul.f32 %v58, %v63
    %v65 = vmul.f32 %v45, %v64
    %v66 = vmax.f32 %v65, -1e+20
    %v67 = vmin.f32 %v66, 1e+20
    %v68 = vsel %vm54, %v67, -1e+30
    %s69 = ssub.f32 128.0, %s49
    %s70 = smul.f32 %s69, %s47
    %s71 = sadd.f32 %s46, %s70
    %vm72 = vcmask 1040384
    %v73 = vsel %vm72, %v68, -inf
    %74 = vmax.xlane.f32.xlu0 %v73
    %v75 = vpop.xlane.xlu0 %74
    %v76 = vsel %vm54, %v67, 1e+30
    %v77 = vsel %vm72, %v76, inf
    %78 = vmin.xlane.f32.xlu0 %v77
    %v79 = vpop.xlane.xlu0 %78
    %v80 = vstv %s47
    %v81 = vsub.f32 %v80, %v75
    %v82 = vstv %s48
    %v83 = vsub.f32 %v82, %v79
    %v84 = vlaneseq
    %v85 = vshrl.u32 %v84, 7
    %v86 = vsub.s32 0, %v85
    %v87 = vrot.slane %v68, %v86
    %v88 = vlaneseq
    %v89 = vshrl.u32 %v88, 7
    %v90 = vadd.s32 %v89, 8
    %v91 = vadd.s32 %v89, 1
    %v92 = vadd.s32 %v90, 1
    %v93 = vcvt.s32.f32 %v91
    %v94 = vcvt.s32.f32 %v92
    %v95 = vsub.f32 %v83, %v81
    %v96 = vmul.f32 %v95, 0.05882353
    %v97 = vlaneseq
    %v98 = vshrl.u32 %v97, 7
    %v99 = vsub.s32 0, %v98
    %v100 = vrot.slane %v96, %v99
    %v101 = vmul.f32 %v93, %v100
    %v102 = vmul.f32 %v94, %v100
    %v103 = vlaneseq
    %v104 = vshrl.u32 %v103, 7
    %v105 = vsub.s32 0, %v104
    %v106 = vrot.slane %v81, %v105
    %v107 = vadd.f32 %v106, %v101
    %v108 = vadd.f32 %v106, %v102
    %v109 = vadd.f32 %v87, %v107
    %v110 = vadd.f32 %v87, %v108
    %v111 = vmax.f32 %v80, %v109
    %v112 = vmax.f32 %v80, %v110
    %v113 = vmin.f32 %v82, %v111
    %v114 = vmin.f32 %v82, %v112
    %115 = vadd.xlane.f32.xlu0 %v113
    %v116 = vpop.xlane.xlu0 %115
    %117 = vadd.xlane.f32.xlu0 %v114
    %v118 = vpop.xlane.xlu0 %117
    %v119 = vstv %s71
    %vm120 = vcmp.lt.f32.partialorder %v116, %v119
    %vm121 = vcmp.lt.f32.partialorder %v118, %v119
    %v122 = vsel %vm120, %v107, %v106
    %v123 = vsel %vm121, %v108, %v106
    %v124 = vmax.f32 %v122, %v123
    %v125 = vrot.slane %v124, 4
    %v126 = vmax.f32 %v124, %v125
    %v127 = vrot.slane %v126, 2
    %v128 = vmax.f32 %v126, %v127
    %v129 = vrot.slane %v128, 1
    %v130 = vmax.f32 %v128, %v129
    %v131 = vlaneseq
    %v132 = vshrl.u32 %v131, 7
    %v133 = vsub.s32 0, %v132
    %v134 = vrot.slane %v83, %v133
    %v135 = vsel %vm120, %v134, %v107
    %v136 = vsel %vm121, %v134, %v108
    %v137 = vmin.f32 %v135, %v136
    %v138 = vrot.slane %v137, 4
    %v139 = vmin.f32 %v137, %v138
    %v140 = vrot.slane %v139, 2
    %v141 = vmin.f32 %v139, %v140
    %v142 = vrot.slane %v141, 1
    %v143 = vmin.f32 %v141, %v142
    %v144 = vsub.f32 %v143, %v130
    %v145 = vmul.f32 %v144, 0.05882353
    %v146 = vmul.f32 %v93, %v145
    %v147 = vmul.f32 %v94, %v145
    %v148 = vadd.f32 %v130, %v146
    %v149 = vadd.f32 %v130, %v147
    %v150 = vadd.f32 %v87, %v148
    %v151 = vadd.f32 %v87, %v149
    %v152 = vmax.f32 %v80, %v150
    %v153 = vmax.f32 %v80, %v151
    %v154 = vmin.f32 %v82, %v152
    %v155 = vmin.f32 %v82, %v153
    %156 = vadd.xlane.f32.xlu0 %v154
    %v157 = vpop.xlane.xlu0 %156
    %158 = vadd.xlane.f32.xlu0 %v155
    %v159 = vpop.xlane.xlu0 %158
    %vm160 = vcmp.lt.f32.partialorder %v157, %v119
    %vm161 = vcmp.lt.f32.partialorder %v159, %v119
    %v162 = vsel %vm160, %v148, %v130
    %v163 = vsel %vm161, %v149, %v130
    %v164 = vmax.f32 %v162, %v163
    %v165 = vrot.slane %v164, 4
    %v166 = vmax.f32 %v164, %v165
    %v167 = vrot.slane %v166, 2
    %v168 = vmax.f32 %v166, %v167
    %v169 = vrot.slane %v168, 1
    %v170 = vmax.f32 %v168, %v169
    %v171 = vsel %vm160, %v143, %v148
    %v172 = vsel %vm161, %v143, %v149
    %v173 = vmin.f32 %v171, %v172
    %v174 = vrot.slane %v173, 4
    %v175 = vmin.f32 %v173, %v174
    %v176 = vrot.slane %v175, 2
    %v177 = vmin.f32 %v175, %v176
    %v178 = vrot.slane %v177, 1
    %v179 = vmin.f32 %v177, %v178
    %v180 = vsub.f32 %v179, %v170
    %v181 = vmul.f32 %v180, 0.05882353
    %v182 = vmul.f32 %v93, %v181
    %v183 = vmul.f32 %v94, %v181
    %v184 = vadd.f32 %v170, %v182
    %v185 = vadd.f32 %v170, %v183
    %v186 = vadd.f32 %v87, %v184
    %v187 = vadd.f32 %v87, %v185
    %v188 = vmax.f32 %v80, %v186
    %v189 = vmax.f32 %v80, %v187
    %v190 = vmin.f32 %v82, %v188
    %v191 = vmin.f32 %v82, %v189
    %192 = vadd.xlane.f32.xlu0 %v190
    %v193 = vpop.xlane.xlu0 %192
    %194 = vadd.xlane.f32.xlu0 %v191
    %v195 = vpop.xlane.xlu0 %194
    %vm196 = vcmp.lt.f32.partialorder %v193, %v119
    %vm197 = vcmp.lt.f32.partialorder %v195, %v119
    %v198 = vsel %vm196, %v184, %v170
    %v199 = vsel %vm197, %v185, %v170
    %v200 = vmax.f32 %v198, %v199
    %v201 = vrot.slane %v200, 4
    %v202 = vmax.f32 %v200, %v201
    %v203 = vrot.slane %v202, 2
    %v204 = vmax.f32 %v202, %v203
    %v205 = vrot.slane %v204, 1
    %v206 = vmax.f32 %v204, %v205
    %v207 = vsel %vm196, %v179, %v184
    %v208 = vsel %vm197, %v179, %v185
    %v209 = vmin.f32 %v207, %v208
    %v210 = vrot.slane %v209, 4
    %v211 = vmin.f32 %v209, %v210
    %v212 = vrot.slane %v211, 2
    %v213 = vmin.f32 %v211, %v212
    %v214 = vrot.slane %v213, 1
    %v215 = vmin.f32 %v213, %v214
    %v216 = vsub.f32 %v215, %v206
    %v217 = vmul.f32 %v216, 0.05882353
    %v218 = vmul.f32 %v93, %v217
    %v219 = vmul.f32 %v94, %v217
    %v220 = vadd.f32 %v206, %v218
    %v221 = vadd.f32 %v206, %v219
    %v222 = vadd.f32 %v87, %v220
    %v223 = vadd.f32 %v87, %v221
    %v224 = vmax.f32 %v80, %v222
    %v225 = vmax.f32 %v80, %v223
    %v226 = vmin.f32 %v82, %v224
    %v227 = vmin.f32 %v82, %v225
    %228 = vadd.xlane.f32.xlu0 %v226
    %v229 = vpop.xlane.xlu0 %228
    %230 = vadd.xlane.f32.xlu0 %v227
    %v231 = vpop.xlane.xlu0 %230
    %vm232 = vcmp.lt.f32.partialorder %v229, %v119
    %vm233 = vcmp.lt.f32.partialorder %v231, %v119
    %v234 = vsel %vm232, %v220, %v206
    %v235 = vsel %vm233, %v221, %v206
    %v236 = vmax.f32 %v234, %v235
    %v237 = vrot.slane %v236, 4
    %v238 = vmax.f32 %v236, %v237
    %v239 = vrot.slane %v238, 2
    %v240 = vmax.f32 %v238, %v239
    %v241 = vrot.slane %v240, 1
    %v242 = vmax.f32 %v240, %v241
    %v243 = vsel %vm232, %v215, %v220
    %v244 = vsel %vm233, %v215, %v221
    %v245 = vmin.f32 %v243, %v244
    %v246 = vrot.slane %v245, 4
    %v247 = vmin.f32 %v245, %v246
    %v248 = vrot.slane %v247, 2
    %v249 = vmin.f32 %v247, %v248
    %v250 = vrot.slane %v249, 1
    %v251 = vmin.f32 %v249, %v250
    %v252 = vsub.f32 %v251, %v242
    %v253 = vmul.f32 %v252, 0.05882353
    %v254 = vmul.f32 %v93, %v253
    %v255 = vmul.f32 %v94, %v253
    %v256 = vadd.f32 %v242, %v254
    %v257 = vadd.f32 %v242, %v255
    %v258 = vadd.f32 %v87, %v256
    %v259 = vadd.f32 %v87, %v257
    %v260 = vmax.f32 %v80, %v258
    %v261 = vmax.f32 %v80, %v259
    %v262 = vmin.f32 %v82, %v260
    %v263 = vmin.f32 %v82, %v261
    %264 = vadd.xlane.f32.xlu0 %v262
    %v265 = vpop.xlane.xlu0 %264
    %266 = vadd.xlane.f32.xlu0 %v263
    %v267 = vpop.xlane.xlu0 %266
    %vm268 = vcmp.lt.f32.partialorder %v265, %v119
    %vm269 = vcmp.lt.f32.partialorder %v267, %v119
    %v270 = vsel %vm268, %v256, %v242
    %v271 = vsel %vm269, %v257, %v242
    %v272 = vmax.f32 %v270, %v271
    %v273 = vrot.slane %v272, 4
    %v274 = vmax.f32 %v272, %v273
    %v275 = vrot.slane %v274, 2
    %v276 = vmax.f32 %v274, %v275
    %v277 = vrot.slane %v276, 1
    %v278 = vmax.f32 %v276, %v277
    %v279 = vsel %vm268, %v251, %v256
    %v280 = vsel %vm269, %v251, %v257
    %v281 = vmin.f32 %v279, %v280
    %v282 = vrot.slane %v281, 4
    %v283 = vmin.f32 %v281, %v282
    %v284 = vrot.slane %v283, 2
    %v285 = vmin.f32 %v283, %v284
    %v286 = vrot.slane %v285, 1
    %v287 = vmin.f32 %v285, %v286
    %v288 = vsub.f32 %v287, %v278
    %v289 = vmul.f32 %v288, 0.05882353
    %v290 = vmul.f32 %v93, %v289
    %v291 = vmul.f32 %v94, %v289
    %v292 = vadd.f32 %v278, %v290
    %v293 = vadd.f32 %v278, %v291
    %v294 = vadd.f32 %v87, %v292
    %v295 = vadd.f32 %v87, %v293
    %v296 = vmax.f32 %v80, %v294
    %v297 = vmax.f32 %v80, %v295
    %v298 = vmin.f32 %v82, %v296
    %v299 = vmin.f32 %v82, %v297
    %300 = vadd.xlane.f32.xlu0 %v298
    %v301 = vpop.xlane.xlu0 %300
    %302 = vadd.xlane.f32.xlu0 %v299
    %v303 = vpop.xlane.xlu0 %302
    %vm304 = vcmp.lt.f32.partialorder %v301, %v119
    %vm305 = vcmp.lt.f32.partialorder %v303, %v119
    %v306 = vsel %vm304, %v292, %v278
    %v307 = vsel %vm305, %v293, %v278
    %v308 = vmax.f32 %v306, %v307
    %v309 = vrot.slane %v308, 4
    %v310 = vmax.f32 %v308, %v309
    %v311 = vrot.slane %v310, 2
    %v312 = vmax.f32 %v310, %v311
    %v313 = vrot.slane %v312, 1
    %v314 = vmax.f32 %v312, %v313
    %v315 = vsel %vm304, %v287, %v292
    %v316 = vsel %vm305, %v287, %v293
    %v317 = vmin.f32 %v315, %v316
    %v318 = vrot.slane %v317, 4
    %v319 = vmin.f32 %v317, %v318
    %v320 = vrot.slane %v319, 2
    %v321 = vmin.f32 %v319, %v320
    %v322 = vrot.slane %v321, 1
    %v323 = vmin.f32 %v321, %v322
    %v324 = vadd.f32 %v314, %v323
    %v325 = vmul.f32 %v324, 0.5
    %v326 = vadd.f32 %v68, %v325
    %v327 = vmax.f32 %v80, %v326
    %v328 = vmin.f32 %v82, %v327
    %v329 = vmul.f32 %v328, %v56
    %v330 = vmul.f32 %v329, %v43
    %v331 = vmul.f32 %v60, 2.0
    %v332 = vmul.f32 %v331, %v60
    %v333 = vrcp.pop %v332
    %v334 = vmul.f32 %v330, %v333
    %v335 = vadd.f32 %v334, %v44
    %v336 = vmul.f32 %v335, %v56
    %v337 = vsel %vm72, %v336, 0.0
    %338 = vadd.xlane.f32.xlu0 %v337
    %v339 = vpop.xlane.xlu0 %338
    %340 = vst [vmem:[#allocation7] sm:$0x1] %v329
    %341 = vst [vmem:[#allocation7 + $0x1] sm:$0x1] %v336
    %342 = vst [vmem:[#allocation7 + $0x2] sm:$0x1] %v339
    // Predicated region
    $region26: #{tpu_custom_call.1} parent=1 // pred_check
      _
    $region27: #{tpu_custom_call.1} parent=1 // pred_check_branch
      %344 = sbr.rel (0) target = $region29
    $region28: #{tpu_custom_call.1} parent=1 // pred_region
      %s346 = ssub.s32 64, 64
      %347 = vsyncadd [#allocation4], %s346
      %s349 = sshll.u32 [#allocation7], 4
      %s350 = int_to_ptr.vmem [resolvable:$true] %s349
      %352 = dma.vmem_to_hbm [thread:$0]  %s350, 64, %s4, [#allocation4]
    $region29: #{tpu_custom_call.1} parent=1 // pred_fallthru
      _
    // Predicated region
    $region30: #{tpu_custom_call.1} parent=1 // pred_check
      _
    $region31: #{tpu_custom_call.1} parent=1 // pred_check_branch
      %354 = sbr.rel (0) target = $region33
    $region32: #{tpu_custom_call.1} parent=1 // pred_region
      %355 = dma.done [#allocation4], 64
    $region33: #{tpu_custom_call.1} parent=1 // pred_fallthru
      _
    %356 = vsyncpa [#allocation3], 1
    %357 = vsyncpa [#allocation4], 1
    %358 = vsyncpa [#allocation5], 1

</llo_original>
